<compile_context>
chip_gen: v6e
topology: v6e:2x2x1
jax: 0.10.0
libtpu: 0.0.40
codegen_flags: <defaults>
</compile_context>

<pallas_src>
import functools

import numpy as np
import jax
import jax.numpy as jnp
from jax.experimental import pallas as pl
from jax.experimental.pallas import tpu as pltpu

_LANES = 128


def _nsp_head_kernel(x_ref, w_ref, b_ref, out_ref, *, n_out):
    # x_ref : (tm, H)   f32 row tile of pooled outputs (cast to bf16 in-kernel)
    # w_ref : (H, 128)  bf16 padded W^T (grid-invariant)
    # b_ref : (1, 128)  f32 padded bias (grid-invariant)
    # out   : (tm, n_out) logits tile (narrow masked store, no slab writeback)
    x = x_ref[...].astype(w_ref.dtype)                       # f32 -> bf16 on the VPU
    acc = jnp.dot(x, w_ref[...], preferred_element_type=jnp.float32)
    acc = acc + b_ref[...]
    out_ref[...] = acc[:, :n_out].astype(out_ref.dtype)


def prepare_nsp_head_params(params, compute_dtype=jnp.bfloat16):
    """One-time parameter plumbing: W (2, H) -> padded (H, 128) bf16, b -> (1, 128) f32."""
    w = params["seq_relationship_w"]          # (2, H) -- PyTorch nn.Linear layout
    b = params["seq_relationship_b"]          # (2,)
    n_out, hidden = w.shape
    wt = jnp.zeros((hidden, _LANES), compute_dtype).at[:, :n_out].set(
        w.T.astype(compute_dtype))
    bp = jnp.zeros((1, _LANES), jnp.float32).at[0, :n_out].set(b.astype(jnp.float32))
    return {"wt": wt, "bp": bp, "n_out": n_out}


def _choose_tm(m, h):
    # Double-buffered f32 x tile + (lane-padded-in-VMEM) f32 out tile per row.
    budget = 20 << 20
    per_row = 2 * 4 * (h + _LANES)
    tm_cap = max(8, min(2048, budget // per_row))
    tm_cap = (tm_cap // 8) * 8
    if m <= tm_cap:
        return m                              # single tile; block dim == full dim is legal
    return tm_cap


def bert_only_nsp_head(pooled_output, prepared, *, tm=None):
    """seq_relationship_score = pooled_output @ W^T + b, using prepared (padded) params."""
    M, H = pooled_output.shape
    wt, bp, n_out = prepared["wt"], prepared["bp"], prepared["n_out"]
    assert wt.shape[0] == H
    NP = wt.shape[1]

    if tm is None:
        tm = _choose_tm(M, H)
    tm = min(tm, M)
    if tm != M:
        tm = max(8, (tm // 8) * 8)            # f32 sublane packing when tiling rows

    grid = (pl.cdiv(M, tm),)                  # partial last block; no row padding

    # VMEM budget from actual need (double-buffered x/out tiles, invariant w/b) + headroom.
    w_item = jnp.dtype(wt.dtype).itemsize
    vmem_est = (2 * tm * H * 4                # x tile, f32, double-buffered
                + 2 * H * NP * w_item         # padded weight
                + 2 * 8 * NP * 4              # padded bias tile
                + 2 * tm * NP * 4)            # out tile (lane-padded in VMEM)
    vmem_limit = int(min(vmem_est + (4 << 20), 32 << 20))

    kernel = functools.partial(_nsp_head_kernel, n_out=n_out)
    out = pl.pallas_call(
        kernel,
        out_shape=jax.ShapeDtypeStruct((M, n_out), pooled_output.dtype),
        grid_spec=pltpu.PrefetchScalarGridSpec(
            num_scalar_prefetch=0,
            grid=grid,
            in_specs=[
                pl.BlockSpec((tm, H), lambda i: (i, 0)),     # pooled_output row tile (f32)
                pl.BlockSpec((H, NP), lambda i: (0, 0)),     # padded W^T (grid-invariant)
                pl.BlockSpec((1, NP), lambda i: (0, 0)),     # padded bias (grid-invariant)
            ],
            out_specs=pl.BlockSpec((tm, n_out), lambda i: (i, 0)),
        ),
        compiler_params=pltpu.CompilerParams(
            dimension_semantics=("parallel",),
            vmem_limit_bytes=vmem_limit,
        ),
    )(pooled_output, wt, bp)
    return out


def init_params(key, hidden_size, num_labels=2):
    kw, kb = jax.random.split(key)
    return {
        "seq_relationship_w": 0.02 * jax.random.normal(kw, (num_labels, hidden_size), jnp.float32),
        "seq_relationship_b": 0.02 * jax.random.normal(kb, (num_labels,), jnp.float32),
    }


def reference(pooled_output, params):
    return jnp.matmul(pooled_output, params["seq_relationship_w"].T,
                      precision=jax.lax.Precision.HIGHEST) + params["seq_relationship_b"]


if __name__ == "__main__":
    B, H = 8, 128   # small batch of pooled [CLS] vectors, hidden_size
    key = jax.random.PRNGKey(0)
    kx, kp = jax.random.split(key)
    pooled = jax.random.normal(kx, (B, H), jnp.float32)
    params = init_params(kp, H)
    prepared = prepare_nsp_head_params(params)   # hoisted out of the per-call path

    out = bert_only_nsp_head(pooled, prepared)
    out = jax.block_until_ready(out)
    assert out.shape == (B, 2)

    ref = reference(pooled, params)
    # bf16 operands with f32 accumulation: well inside 1e-2 for H=128, 0.02-scale weights.
    np.testing.assert_allclose(np.asarray(out), np.asarray(ref), rtol=1e-2, atol=1e-2)
    print("KERNEL_OK")
</pallas_src>

<mosaic_0001>
module attributes {stable_mosaic.version = 11 : i64} {
  func.func @_nsp_head_kernel(%arg0: i32, %arg1: memref<8x128xf32, #tpu.memory_space<vmem>>, %arg2: memref<128x128xbf16, #tpu.memory_space<vmem>>, %arg3: memref<1x128xf32, #tpu.memory_space<vmem>>, %arg4: memref<8x2xf32, #tpu.memory_space<vmem>>) attributes {dimension_semantics = [#tpu.dimension_semantics<parallel>], iteration_bounds = array<i64: 1>, scalar_prefetch = 0 : i64, scratch_operands = 0 : i64, tpu.core_type = #tpu.core_type<tc>, window_params = [{transform_indices = @transform_0, window_bounds = array<i64: 8, 128>}, {pipeline_mode = #tpu.pipeline_mode<synchronous>, transform_indices = @transform_1, window_bounds = array<i64: 128, 128>}, {pipeline_mode = #tpu.pipeline_mode<synchronous>, transform_indices = @transform_2, window_bounds = array<i64: 1, 128>}, {transform_indices = @transform_3, window_bounds = array<i64: 8, 2>}]} {
    %c0 = arith.constant 0 : index
    %c0_0 = arith.constant 0 : index
    %0 = vector.load %arg1[%c0, %c0_0] : memref<8x128xf32, #tpu.memory_space<vmem>>, vector<8x128xf32>
    %1 = arith.truncf %0 : vector<8x128xf32> to vector<8x128xbf16>
    %c0_1 = arith.constant 0 : index
    %c0_2 = arith.constant 0 : index
    %2 = vector.load %arg2[%c0_1, %c0_2] : memref<128x128xbf16, #tpu.memory_space<vmem>>, vector<128x128xbf16>
    %cst = arith.constant dense<0.000000e+00> : vector<8x128xf32>
    %3 = tpu.matmul %1, %2, %cst {dimension_numbers = #tpu.dot_dimension_numbers<[1], [0], [0], [1], [0, 0, 1, 1], [], []>} : vector<8x128xbf16>, vector<128x128xbf16>, vector<8x128xf32> -> vector<8x128xf32>
    %c0_3 = arith.constant 0 : index
    %c0_4 = arith.constant 0 : index
    %4 = vector.load %arg3[%c0_3, %c0_4] : memref<1x128xf32, #tpu.memory_space<vmem>>, vector<1x128xf32>
    %5 = vector.broadcast %4 : vector<1x128xf32> to vector<8x128xf32>
    %6 = arith.addf %3, %5 : vector<8x128xf32>
    %7 = vector.extract_strided_slice %6 {offsets = [0, 0], sizes = [8, 2], strides = [1, 1]} : vector<8x128xf32> to vector<8x2xf32>
    %c0_5 = arith.constant 0 : index
    %c0_6 = arith.constant 0 : index
    %8 = vector.load %arg4[%c0_5, %c0_6] : memref<8x2xf32, #tpu.memory_space<vmem>>, vector<8x2xf32>
    tpu.vector_store %arg4[%c0_5, %c0_6], %7 {strides = array<i32>} : memref<8x2xf32, #tpu.memory_space<vmem>>, vector<8x2xf32>,
    return
  }
  func.func @transform_0(%arg0: i32) -> (i32, i32) {
    %c0_i32 = arith.constant 0 : i32
    %c0_i32_0 = arith.constant 0 : i32
    return %arg0, %c0_i32 : i32, i32
  }
  func.func @transform_1(%arg0: i32) -> (i32, i32) {
    %c0_i32 = arith.constant 0 : i32
    %c0_i32_0 = arith.constant 0 : i32
    %c0_i32_1 = arith.constant 0 : i32
    return %c0_i32, %c0_i32_0 : i32, i32
  }
  func.func @transform_2(%arg0: i32) -> (i32, i32) {
    %c0_i32 = arith.constant 0 : i32
    %c0_i32_0 = arith.constant 0 : i32
    %c0_i32_1 = arith.constant 0 : i32
    return %c0_i32, %c0_i32_0 : i32, i32
  }
  func.func @transform_3(%arg0: i32) -> (i32, i32) {
    %c0_i32 = arith.constant 0 : i32
    %c0_i32_0 = arith.constant 0 : i32
    return %arg0, %c0_i32 : i32, i32
  }
}

</mosaic_0001>

<llo_original>
// kernel: tpu_custom_call.1
$region0: #{tpu_custom_call.1}
  #allocation0 [shape = 'u32[]', space=smem, size = 0x4, offset = 0x4, fixed_abs, tag = 'smem constant byte address 0x4 - core index']
  #allocation1 [shape = 'u32[144,128]{1,0:T(1,128)}', space=vmem, size = 0x12000, scoped, tag = 'internal scratch']
  %s0 = inlined_call_operand.hbm [shape: f32[8,128], index: 0, kind: input, shape index: {}]
  %s1 = inlined_call_operand.hbm [shape: bf16[128,128], index: 1, kind: input, shape index: {}]
  %s2 = inlined_call_operand.vmem [shape: f32[1,128], index: 2, kind: input, shape index: {}]
  %s3 = inlined_call_operand.vmem [shape: f32[8,2], index: 3, kind: output, shape index: {}]
  %s4 = sld [smem:[#allocation0]]
  $region30: #{tpu_custom_call.1} parent=0
    _
  %s6 = ssub.s32 1, %s4
  %s7 = scalar_select 0, %s6, %s4
  $region1: #{tpu_custom_call.1} parent=0
    #allocation2 [shape = 'u8[4096]{0}', space=vmem, size = 0x1000, scoped, tag = 'input window, operand 0, single buffered']
    #allocation3 [shape = 's32[1]{0}', space=sflag, size = 0x4, scoped, tag = 'scoped memory for tpu_custom_call.1']
    #allocation4 [shape = 'u8[32768]{0}', space=vmem, size = 0x8000, scoped, tag = 'input window, operand 1, single buffered']
    #allocation5 [shape = 's32[1]{0}', space=sflag, size = 0x4, scoped, tag = 'scoped memory for tpu_custom_call.1']
    %8 = vsyncpa [#allocation3], 0
    %9 = vsyncpa [#allocation5], 0
    // Predicated region
    $region2: #{tpu_custom_call.1} parent=1 // pred_check
      _
    $region3: #{tpu_custom_call.1} parent=1 // pred_check_branch
      %11 = sbr.rel (0) target = $region5
    $region4: #{tpu_custom_call.1} parent=1 // pred_region
      %s13 = ssub.s32 128, 128
      %14 = vsyncadd [#allocation3], %s13
      %s16 = sshll.u32 [#allocation2], 4
      %s17 = int_to_ptr.vmem [resolvable:$true] %s16
      %19 = dma.hbm_to_vmem [thread:$0]  %s0, 128, %s17, [#allocation3]
    $region5: #{tpu_custom_call.1} parent=1 // pred_fallthru
      _
    // Predicated region
    $region6: #{tpu_custom_call.1} parent=1 // pred_check
      _
    $region7: #{tpu_custom_call.1} parent=1 // pred_check_branch
      %21 = sbr.rel (0) target = $region9
    $region8: #{tpu_custom_call.1} parent=1 // pred_region
      %s23 = ssub.s32 1024, 1024
      %24 = vsyncadd [#allocation5], %s23
      %s25 = sshll.u32 [#allocation4], 4
      %s26 = int_to_ptr.vmem [resolvable:$true] %s25
      %31 = dma.hbm_to_vmem [thread:$0]  %s1, 1024, %s26, [#allocation5], 64, 64, 4
    $region9: #{tpu_custom_call.1} parent=1 // pred_fallthru
      _
    // Predicated region
    $region10: #{tpu_custom_call.1} parent=1 // pred_check
      _
    $region11: #{tpu_custom_call.1} parent=1 // pred_check_branch
      %33 = sbr.rel (0) target = $region13
    $region12: #{tpu_custom_call.1} parent=1 // pred_region
      _
    $region13: #{tpu_custom_call.1} parent=1 // pred_fallthru
      _
    // Predicated region
    $region14: #{tpu_custom_call.1} parent=1 // pred_check
      _
    $region15: #{tpu_custom_call.1} parent=1 // pred_check_branch
      %35 = sbr.rel (0) target = $region17
    $region16: #{tpu_custom_call.1} parent=1 // pred_region
      %36 = dma.done [#allocation3], 128
    $region17: #{tpu_custom_call.1} parent=1 // pred_fallthru
      _
    // Predicated region
    $region18: #{tpu_custom_call.1} parent=1 // pred_check
      _
    $region19: #{tpu_custom_call.1} parent=1 // pred_check_branch
      %38 = sbr.rel (0) target = $region21
    $region20: #{tpu_custom_call.1} parent=1 // pred_region
      %39 = dma.done [#allocation5], 1024
    $region21: #{tpu_custom_call.1} parent=1 // pred_fallthru
      _
    %v41 = vld [vmem:[#allocation2] sm:$0xff]
    %v42 = vpack.c.bf16 %v41, %v41
    %v43 = vld [vmem:[#allocation4] sm:$0xf]
    %v44 = vld [vmem:[#allocation4 + $0x4] sm:$0xf]
    %v45 = vld [vmem:[#allocation4 + $0x8] sm:$0xf]
    %v46 = vld [vmem:[#allocation4 + $0xc] sm:$0xf]
    %v47 = vld [vmem:[#allocation4 + $0x10] sm:$0xf]
    %v48 = vld [vmem:[#allocation4 + $0x14] sm:$0xf]
    %v49 = vld [vmem:[#allocation4 + $0x18] sm:$0xf]
    %v50 = vld [vmem:[#allocation4 + $0x1c] sm:$0xf]
    %v51 = vld [vmem:[#allocation4 + $0x20] sm:$0xf]
    %v52 = vld [vmem:[#allocation4 + $0x24] sm:$0xf]
    %v53 = vld [vmem:[#allocation4 + $0x28] sm:$0xf]
    %v54 = vld [vmem:[#allocation4 + $0x2c] sm:$0xf]
    %v55 = vld [vmem:[#allocation4 + $0x30] sm:$0xf]
    %v56 = vld [vmem:[#allocation4 + $0x34] sm:$0xf]
    %v57 = vld [vmem:[#allocation4 + $0x38] sm:$0xf]
    %v58 = vld [vmem:[#allocation4 + $0x3c] sm:$0xf]
    %v59 = vld [vmem:[%s2] sm:$0x1]
    %v61 = vlaneseq
    %v62 = vshrl.u32 %v61, 7
    %v63 = vsub.s32 0, %v62
    %v64 = vrot.slane %v59, %v63
    %v82 = vunpack.c.l.b16 %v43
    %v83 = vunpack.c.l.b16 %v44
    %v84 = vunpack.c.l.b16 %v45
    %v85 = vunpack.c.l.b16 %v46
    %v86 = vunpack.c.l.b16 %v47
    %v87 = vunpack.c.l.b16 %v48
    %v88 = vunpack.c.l.b16 %v49
    %v89 = vunpack.c.l.b16 %v50
    %v90 = vunpack.c.l.b16 %v51
    %v91 = vunpack.c.l.b16 %v52
    %v92 = vunpack.c.l.b16 %v53
    %v93 = vunpack.c.l.b16 %v54
    %v94 = vunpack.c.l.b16 %v55
    %v95 = vunpack.c.l.b16 %v56
    %v96 = vunpack.c.l.b16 %v57
    %v97 = vunpack.c.l.b16 %v58
    %v98 = vpack.c.b16 %v83, %v82
    %v99 = vpack.c.b16 %v85, %v84
    %v100 = vpack.c.b16 %v87, %v86
    %v101 = vpack.c.b16 %v89, %v88
    %v102 = vpack.c.b16 %v91, %v90
    %v103 = vpack.c.b16 %v93, %v92
    %v104 = vpack.c.b16 %v95, %v94
    %v105 = vpack.c.b16 %v97, %v96
    %114 = vmatprep.subr.bf16.mxu0 0
    %115 = vmatpush1.bf16.msra.mxu0 %v105
    %116 = vmatprep.subr.bf16.mxu0 0
    %117 = vmatpush1.bf16.msra.mxu0 %v104
    %118 = vmatprep.subr.bf16.mxu0 0
    %119 = vmatpush1.bf16.msra.mxu0 %v103
    %120 = vmatprep.subr.bf16.mxu0 0
    %121 = vmatpush1.bf16.msra.mxu0 %v102
    %122 = vmatprep.subr.bf16.mxu0 0
    %123 = vmatpush1.bf16.msra.mxu0 %v101
    %124 = vmatprep.subr.bf16.mxu0 0
    %125 = vmatpush1.bf16.msra.mxu0 %v100
    %126 = vmatprep.subr.bf16.mxu0 0
    %127 = vmatpush1.bf16.msra.mxu0 %v99
    %128 = vmatprep.subr.bf16.mxu0 0
    %129 = vmatpush1.bf16.msra.mxu0 %v98
    %130 = vmatprep.subr.bf16.mxu0 0
    %131 = vmatpush2.bf16.msra.mxu0 0
    %132 = vmatprep.subr.bf16.mxu0 0
    %133 = vmatpush2.bf16.msra.mxu0 0
    %134 = vmatprep.subr.bf16.mxu0 0
    %135 = vmatpush2.bf16.msra.mxu0 0
    %136 = vmatprep.subr.bf16.mxu0 0
    %137 = vmatpush2.bf16.msra.mxu0 0
    %138 = vmatprep.subr.bf16.mxu0 0
    %139 = vmatpush2.bf16.msra.mxu0 0
    %140 = vmatprep.subr.bf16.mxu0 0
    %141 = vmatpush2.bf16.msra.mxu0 0
    %142 = vmatprep.subr.bf16.mxu0 0
    %143 = vmatpush2.bf16.msra.mxu0 0
    %144 = vmatprep.subr.bf16.mxu0 0
    %145 = vmatpush2.bf16.msra.mxu0 0
    %146 = vmatprep.mubr.bf16.mxu0 0
    %147 = vmatmul.mubr.bf16.gmra.mxu0 %v42
    %v148 = vpop.f32.mrf.mxu0
    %v149 = vadd.f32 %v64, %v148
    %v150 = vpop.f32.mrf.mxu0
    %v151 = vpop.f32.mrf.mxu0
    %v152 = vpop.f32.mrf.mxu0
    %153 = vdwg.mxu0
    %vm154 = vcmask 15360
    %155 = vst.msk [vmem:[%s3] sm:$0xff] %vm154, %v149
    // Predicated region
    $region22: #{tpu_custom_call.1} parent=1 // pred_check
      _
    $region23: #{tpu_custom_call.1} parent=1 // pred_check_branch
      %157 = sbr.rel (0) target = $region25
    $region24: #{tpu_custom_call.1} parent=1 // pred_region
      _
    $region25: #{tpu_custom_call.1} parent=1 // pred_fallthru
      _
    // Predicated region
    $region26: #{tpu_custom_call.1} parent=1 // pred_check
      _
    $region27: #{tpu_custom_call.1} parent=1 // pred_check_branch
      %159 = sbr.rel (0) target = $region29
    $region28: #{tpu_custom_call.1} parent=1 // pred_region
      _
    $region29: #{tpu_custom_call.1} parent=1 // pred_fallthru
      _
    %160 = vsyncpa [#allocation3], 1
    %161 = vsyncpa [#allocation5], 1

</llo_original>
